<compile_context>
chip_gen: v5e
topology: v5e:2x2
jax: 0.10.0
libtpu: 0.0.40
codegen_flags: <defaults>
</compile_context>

<pallas_src>
import jax
import jax.numpy as jnp
from jax.experimental import pallas as pl
from jax.experimental.pallas import tpu as pltpu


def _round_up(x: int, m: int) -> int:
    return ((x + m - 1) // m) * m


# ---------------------------------------------------------------------------
# Kernels
# ---------------------------------------------------------------------------
def _linear_kernel_noreduce(x_ref, w_ref, b_ref, o_ref):
    # x_ref: (tm, K)  w_ref: (K, tn)  b_ref: (1, tn)  o_ref: (tm, tn)
    # Whole K contraction in one MXU call; weights stay VMEM-resident because
    # their block index does not change across the (parallel) batch axis.
    acc = jnp.dot(x_ref[...], w_ref[...], preferred_element_type=jnp.float32)
    o_ref[...] = (acc + b_ref[...].astype(jnp.float32)).astype(o_ref.dtype)


def _linear_kernel_ktiled(x_ref, w_ref, b_ref, o_ref, acc_ref):
    # Fallback for large K: grid = (batch tiles, K tiles), K innermost.
    # x_ref: (tm, tk)  w_ref: (tk, P_pad)  b_ref: (1, P_pad)
    # o_ref: (tm, P_pad)  acc_ref: (tm, P_pad) f32, resident across K steps.
    k = pl.program_id(1)

    @pl.when(k == 0)
    def _():
        acc_ref[...] = jnp.zeros_like(acc_ref)

    acc_ref[...] += jnp.dot(
        x_ref[...], w_ref[...], preferred_element_type=jnp.float32
    )

    @pl.when(k == pl.num_programs(1) - 1)
    def _():
        o_ref[...] = (acc_ref[...] + b_ref[...].astype(jnp.float32)).astype(
            o_ref.dtype
        )


# ---------------------------------------------------------------------------
# Tiling helpers
# ---------------------------------------------------------------------------
def _choose_tm(b_pad8: int, k_row_bytes: int) -> int:
    """Pick the batch tile: big (pipeline efficiency), low padding waste,
    >= 2 tiles when feasible (v7x megacore), x block <= ~4 MiB."""
    cap = min(1024, max(128, (4 << 20) // max(k_row_bytes, 1)))
    cap = (cap // 8) * 8
    if b_pad8 <= 128:
        return b_pad8                       # one small sublane-aligned tile
    if b_pad8 <= 2 * cap:
        # split into two tiles so the parallel batch axis feeds both
        # TensorCores on v7x; 8-aligned, no extra padding beyond <=8 rows.
        return min(cap, _round_up((b_pad8 + 1) // 2, 8))
    best_tm, best_waste = cap, None
    for tm in (1024, 512, 256, 128):
        if tm > cap:
            continue
        waste = _round_up(b_pad8, tm) - b_pad8
        if best_waste is None or waste < best_waste:
            best_tm, best_waste = tm, waste
    return best_tm


def _choose_tn(p_pad: int) -> int:
    if p_pad <= 512:
        return p_pad
    for tn in (512, 384, 256, 128):
        if p_pad % tn == 0:
            return tn
    return 128


# ---------------------------------------------------------------------------
# Wrappers around pallas_call
# ---------------------------------------------------------------------------
def _predict_noreduce(x_flat, w_pad, b_pad):
    """x_flat: (B, K), w_pad: (K, P_pad), b_pad: (1, P_pad) -> (B_pad, P_pad) f32."""
    B, K = x_flat.shape
    _, P_pad = w_pad.shape
    itemsize = jnp.dtype(x_flat.dtype).itemsize

    B8 = _round_up(max(B, 1), 8)
    tm = _choose_tm(B8, K * itemsize)
    B_pad = _round_up(B8, tm)
    if B_pad != B:
        x_flat = jnp.pad(x_flat, ((0, B_pad - B), (0, 0)))

    tn = _choose_tn(P_pad)
    nbt, npt = B_pad // tm, P_pad // tn

    w_bytes = jnp.dtype(w_pad.dtype).itemsize
    # W is re-streamed per batch tile only if it is P-tiled (npt > 1);
    # otherwise its block index never changes and it stays VMEM-resident.
    w_traffic = K * P_pad * w_bytes * (nbt if npt > 1 else 1)

    out = pl.pallas_call(
        _linear_kernel_noreduce,
        out_shape=jax.ShapeDtypeStruct((B_pad, P_pad), jnp.float32),
        grid_spec=pltpu.PrefetchScalarGridSpec(
            num_scalar_prefetch=0,
            grid=(nbt, npt),
            in_specs=[
                # full-K x block (no K padding / no extra copy of x)
                pl.BlockSpec((tm, K), lambda i, j: (i, 0)),
                # weights: resident across batch tiles, tiled only along P
                pl.BlockSpec((K, tn), lambda i, j: (0, j)),
                pl.BlockSpec((1, tn), lambda i, j: (0, j)),
            ],
            out_specs=pl.BlockSpec((tm, tn), lambda i, j: (i, j)),
        ),
        compiler_params=pltpu.CompilerParams(
            dimension_semantics=("parallel", "parallel"),
        ),
        cost_estimate=pl.CostEstimate(
            flops=2 * B_pad * K * P_pad,
            transcendentals=0,
            bytes_accessed=(B_pad * K * itemsize + w_traffic
                            + P_pad * 4 + B_pad * P_pad * 4),
        ),
    )(x_flat, w_pad, b_pad)
    return out, B_pad


def _predict_ktiled(x_flat, w_pad, b_pad, tk):
    """Large-K fallback: x_flat: (B, K), w_pad: (K_pad, P_pad) -> (B_pad, P_pad)."""
    B, K = x_flat.shape
    K_pad, P_pad = w_pad.shape
    itemsize = jnp.dtype(x_flat.dtype).itemsize

    B8 = _round_up(max(B, 1), 8)
    tm = _choose_tm(B8, tk * itemsize)
    B_pad = _round_up(B8, tm)
    if B_pad != B or K_pad != K:
        x_flat = jnp.pad(x_flat, ((0, B_pad - B), (0, K_pad - K)))

    nbt, nkt = B_pad // tm, K_pad // tk
    w_bytes = jnp.dtype(w_pad.dtype).itemsize

    out = pl.pallas_call(
        _linear_kernel_ktiled,
        out_shape=jax.ShapeDtypeStruct((B_pad, P_pad), jnp.float32),
        grid_spec=pltpu.PrefetchScalarGridSpec(
            num_scalar_prefetch=0,
            grid=(nbt, nkt),
            in_specs=[
                pl.BlockSpec((tm, tk), lambda i, k: (i, k)),
                pl.BlockSpec((tk, P_pad), lambda i, k: (k, 0)),
                pl.BlockSpec((1, P_pad), lambda i, k: (0, 0)),
            ],
            out_specs=pl.BlockSpec((tm, P_pad), lambda i, k: (i, 0)),
            scratch_shapes=[pltpu.VMEM((tm, P_pad), jnp.float32)],
        ),
        compiler_params=pltpu.CompilerParams(
            dimension_semantics=("parallel", "arbitrary"),
        ),
        cost_estimate=pl.CostEstimate(
            flops=2 * B_pad * K_pad * P_pad,
            transcendentals=0,
            # weight tiles are re-streamed once per batch tile with K innermost
            bytes_accessed=(B_pad * K_pad * itemsize
                            + nbt * K_pad * P_pad * w_bytes
                            + P_pad * 4 + B_pad * P_pad * 4),
        ),
    )(x_flat, w_pad, b_pad)
    return out, B_pad


# ---------------------------------------------------------------------------
# Minimal concrete realization of the NetworkInterface contract
# ---------------------------------------------------------------------------
class NetworkInterfacePallas:
    _K_RESIDENT_MAX = 2048   # above this K, fall back to the K-tiled kernel

    def __init__(self, lag_size: int, prediction_size: int,
                 number_features: int, device: str = "tpu",
                 compute_dtype=jnp.float32):
        self.lag_size = lag_size
        self.prediction_size = prediction_size
        self.number_features = number_features
        self.device = device
        self.compute_dtype = compute_dtype   # use jnp.bfloat16 on v6e/v7x

        K = lag_size * number_features
        self.K = K
        self.P_pad = _round_up(prediction_size, 128)

        # Deterministic parameter init (synthetic; no checkpoint load).
        kw, kb = jax.random.split(jax.random.PRNGKey(42))
        scale = 1.0 / jnp.sqrt(jnp.float32(K))
        self.weight = jax.random.uniform(
            kw, (K, prediction_size), jnp.float32, -scale, scale)
        self.bias = jax.random.uniform(
            kb, (1, prediction_size), jnp.float32, -scale, scale)

        # --- constant padding hoisted out of predict(): done exactly once ---
        if K > self._K_RESIDENT_MAX:
            # large-K fallback: K padded to a 128-multiple tile, capped so one
            # (tk, P_pad) weight block stays <= ~4 MiB
            tk = min(512, max(128,
                              ((4 << 20) // max(self.P_pad * 4, 1)) // 128 * 128))
            self.tk = tk
            self.K_pad = _round_up(K, tk)
        else:
            self.tk = None
            self.K_pad = K

        w_pad = jnp.zeros((self.K_pad, self.P_pad), jnp.float32)
        w_pad = w_pad.at[:K, :prediction_size].set(self.weight)
        self.w_pad = w_pad.astype(compute_dtype)        # operands may be bf16
        b_pad = jnp.zeros((1, self.P_pad), jnp.float32)  # bias stays f32 (VPU)
        self.b_pad = b_pad.at[:, :prediction_size].set(self.bias)

    def predict(self, x, use_pallas=None):
        # x: (B, lag_size, number_features) -> (B, prediction_size)
        B = x.shape[0]
        x_flat = x.reshape(B, self.K).astype(self.compute_dtype)
        if use_pallas is None:
            # At toy sizes the Pallas dispatch overhead dominates; let XLA
            # fuse the dot+add.  Route to the kernel once the GEMM is real.
            use_pallas = (B * self.K * self.prediction_size) >= (256 * 128 * 128)
        if not use_pallas:
            y = x_flat.astype(jnp.float32) @ self.weight + self.bias
            return y
        if self.tk is None:
            out, _ = _predict_noreduce(x_flat, self.w_pad, self.b_pad)
        else:
            out, _ = _predict_ktiled(x_flat, self.w_pad, self.b_pad, self.tk)
        return out[:B, :self.prediction_size]

    def forward(self, x, y, use_pallas=None):
        # Interface's forward(x, y) is abstract; the concrete realization
        # returns predictions (training-loss wiring is out of scope).
        return self.predict(x, use_pallas=use_pallas)


if __name__ == "__main__":
    # Small shapes consistent with the module's constructor arguments.
    batch = 2
    lag_size = 8
    number_features = 4
    prediction_size = 4

    model = NetworkInterfacePallas(lag_size, prediction_size,
                                   number_features, "tpu")

    key = jax.random.PRNGKey(0)
    x = jax.random.normal(key, (batch, lag_size, number_features), jnp.float32)
    y = jax.random.normal(jax.random.fold_in(key, 1),
                          (batch, prediction_size), jnp.float32)

    # Force the Pallas path so the kernel itself is exercised at demo scale.
    out = model.forward(x, y, use_pallas=True)
    out = jax.block_until_ready(out)

    # Reference check in plain JAX.
    ref = x.reshape(batch, -1) @ model.weight + model.bias
    assert out.shape == (batch, prediction_size)
    assert jnp.allclose(out, ref, atol=1e-5, rtol=1e-5)

    print("KERNEL_OK")
</pallas_src>

<mosaic_0001>
module attributes {stable_mosaic.version = 11 : i64} {
  func.func @_linear_kernel_noreduce(%arg0: i32, %arg1: i32, %arg2: memref<8x32xf32, #tpu.memory_space<vmem>>, %arg3: memref<32x128xf32, #tpu.memory_space<vmem>>, %arg4: memref<1x128xf32, #tpu.memory_space<vmem>>, %arg5: memref<8x128xf32, #tpu.memory_space<vmem>>) attributes {dimension_semantics = [#tpu.dimension_semantics<parallel>, #tpu.dimension_semantics<parallel>], iteration_bounds = array<i64: 1, 1>, scalar_prefetch = 0 : i64, scratch_operands = 0 : i64, tpu.core_type = #tpu.core_type<tc>, window_params = [{transform_indices = @transform_0, window_bounds = array<i64: 8, 32>}, {transform_indices = @transform_1, window_bounds = array<i64: 32, 128>}, {transform_indices = @transform_2, window_bounds = array<i64: 1, 128>}, {transform_indices = @transform_3, window_bounds = array<i64: 8, 128>}]} {
    %c0 = arith.constant 0 : index
    %c0_0 = arith.constant 0 : index
    %0 = vector.load %arg2[%c0, %c0_0] : memref<8x32xf32, #tpu.memory_space<vmem>>, vector<8x32xf32>
    %c0_1 = arith.constant 0 : index
    %c0_2 = arith.constant 0 : index
    %1 = vector.load %arg3[%c0_1, %c0_2] : memref<32x128xf32, #tpu.memory_space<vmem>>, vector<32x128xf32>
    %cst = arith.constant dense<0.000000e+00> : vector<8x128xf32>
    %2 = tpu.matmul %0, %1, %cst {dimension_numbers = #tpu.dot_dimension_numbers<[1], [0], [0], [1], [0, 0, 1, 1], [], []>} : vector<8x32xf32>, vector<32x128xf32>, vector<8x128xf32> -> vector<8x128xf32>
    %c0_3 = arith.constant 0 : index
    %c0_4 = arith.constant 0 : index
    %3 = vector.load %arg4[%c0_3, %c0_4] : memref<1x128xf32, #tpu.memory_space<vmem>>, vector<1x128xf32>
    %4 = vector.broadcast %3 : vector<1x128xf32> to vector<8x128xf32>
    %5 = arith.addf %2, %4 : vector<8x128xf32>
    %c0_5 = arith.constant 0 : index
    %c0_6 = arith.constant 0 : index
    %6 = vector.load %arg5[%c0_5, %c0_6] : memref<8x128xf32, #tpu.memory_space<vmem>>, vector<8x128xf32>
    tpu.vector_store %arg5[%c0_5, %c0_6], %5 {strides = array<i32>} : memref<8x128xf32, #tpu.memory_space<vmem>>, vector<8x128xf32>,
    return
  }
  func.func @transform_0(%arg0: i32, %arg1: i32) -> (i32, i32) {
    %c0_i32 = arith.constant 0 : i32
    %c0_i32_0 = arith.constant 0 : i32
    return %arg0, %c0_i32 : i32, i32
  }
  func.func @transform_1(%arg0: i32, %arg1: i32) -> (i32, i32) {
    %c0_i32 = arith.constant 0 : i32
    %c0_i32_0 = arith.constant 0 : i32
    return %c0_i32, %arg1 : i32, i32
  }
  func.func @transform_2(%arg0: i32, %arg1: i32) -> (i32, i32) {
    %c0_i32 = arith.constant 0 : i32
    %c0_i32_0 = arith.constant 0 : i32
    return %c0_i32, %arg1 : i32, i32
  }
  func.func @transform_3(%arg0: i32, %arg1: i32) -> (i32, i32) {
    %c0_i32 = arith.constant 0 : i32
    return %arg0, %arg1 : i32, i32
  }
}

</mosaic_0001>

<llo_original>
// kernel: tpu_custom_call.1
$region0: #{tpu_custom_call.1}
  #allocation0 [shape = 'u32[]', space=smem, size = 0x4, offset = 0x4, fixed_abs, tag = 'smem constant byte address 0x4 - core index']
  #allocation1 [shape = 'u32[72,128]{1,0:T(1,128)}', space=vmem, size = 0x9000, scoped, tag = 'internal scratch']
  %s0 = inlined_call_operand.hbm [shape: f32[8,32], index: 0, kind: input, shape index: {}]
  %s1 = inlined_call_operand.hbm [shape: f32[32,128], index: 1, kind: input, shape index: {}]
  %s2 = inlined_call_operand.vmem [shape: f32[1,128], index: 2, kind: input, shape index: {}]
  %s3 = inlined_call_operand.hbm [shape: f32[8,128], index: 3, kind: output, shape index: {}]
  %s4 = sld [smem:[#allocation0]]
  $region30: #{tpu_custom_call.1} parent=0
    _
  %s6 = ssub.s32 1, %s4
  %s7 = scalar_select 0, %s6, %s4
  $region1: #{tpu_custom_call.1} parent=0
    #allocation2 [shape = 'u8[4096]{0}', space=vmem, size = 0x1000, scoped, tag = 'input window, operand 0, single buffered']
    #allocation3 [shape = 's32[1]{0}', space=sflag, size = 0x4, scoped, tag = 'scoped memory for tpu_custom_call.1']
    #allocation4 [shape = 's32[1]{0}', space=sflag, size = 0x4, scoped, tag = 'scoped memory for tpu_custom_call.1']
    #allocation5 [shape = 'u8[16384]{0}', space=vmem, size = 0x4000, scoped, tag = 'input window, operand 1, single buffered']
    #allocation6 [shape = 's32[1]{0}', space=sflag, size = 0x4, scoped, tag = 'scoped memory for tpu_custom_call.1']
    #allocation7 [shape = 'u8[4096]{0}', space=vmem, size = 0x1000, scoped, tag = 'output window, operand 0, single buffered']
    %8 = vsyncpa [#allocation3], 0
    %9 = vsyncpa [#allocation6], 0
    %10 = vsyncpa [#allocation4], 0
    // Predicated region
    $region2: #{tpu_custom_call.1} parent=1 // pred_check
      _
    $region3: #{tpu_custom_call.1} parent=1 // pred_check_branch
      %12 = sbr.rel (0) target = $region5
    $region4: #{tpu_custom_call.1} parent=1 // pred_region
      %14 = vsyncadd [#allocation3], 0
      %s16 = sshll.u32 %s0, 4
      %s17 = int_to_ptr.hbm [resolvable:$true] %s16
      %s18 = sshll.u32 [#allocation2], 4
      %s19 = int_to_ptr.vmem [resolvable:$true] %s18
      %21 = dma.hbm_to_vmem [thread:$0]  %s17, 128, %s19, [#allocation3]
    $region5: #{tpu_custom_call.1} parent=1 // pred_fallthru
      _
    // Predicated region
    $region6: #{tpu_custom_call.1} parent=1 // pred_check
      _
    $region7: #{tpu_custom_call.1} parent=1 // pred_check_branch
      %23 = sbr.rel (0) target = $region9
    $region8: #{tpu_custom_call.1} parent=1 // pred_region
      %25 = vsyncadd [#allocation6], 0
      %s26 = sshll.u32 %s1, 4
      %s27 = int_to_ptr.hbm [resolvable:$true] %s26
      %s28 = sshll.u32 [#allocation5], 4
      %s29 = int_to_ptr.vmem [resolvable:$true] %s28
      %34 = dma.hbm_to_vmem [thread:$0]  %s27, 512, %s29, [#allocation6], 128, 128, 8
    $region9: #{tpu_custom_call.1} parent=1 // pred_fallthru
      _
    // Predicated region
    $region10: #{tpu_custom_call.1} parent=1 // pred_check
      _
    $region11: #{tpu_custom_call.1} parent=1 // pred_check_branch
      %36 = sbr.rel (0) target = $region13
    $region12: #{tpu_custom_call.1} parent=1 // pred_region
      _
    $region13: #{tpu_custom_call.1} parent=1 // pred_fallthru
      _
    // Predicated region
    $region14: #{tpu_custom_call.1} parent=1 // pred_check
      _
    $region15: #{tpu_custom_call.1} parent=1 // pred_check_branch
      %38 = sbr.rel (0) target = $region17
    $region16: #{tpu_custom_call.1} parent=1 // pred_region
      %40 = dma.done [#allocation3], 128
    $region17: #{tpu_custom_call.1} parent=1 // pred_fallthru
      _
    // Predicated region
    $region18: #{tpu_custom_call.1} parent=1 // pred_check
      _
    $region19: #{tpu_custom_call.1} parent=1 // pred_check_branch
      %42 = sbr.rel (0) target = $region21
    $region20: #{tpu_custom_call.1} parent=1 // pred_region
      %44 = dma.done [#allocation6], 512
    $region21: #{tpu_custom_call.1} parent=1 // pred_fallthru
      _
    %v45 = vld [vmem:[#allocation2] sm:$0xff]
    %v46 = vld [vmem:[#allocation5] sm:$0xff]
    %v47 = vld [vmem:[#allocation5 + $0x8] sm:$0xff]
    %v48 = vld [vmem:[#allocation5 + $0x10] sm:$0xff]
    %v49 = vld [vmem:[#allocation5 + $0x18] sm:$0xff]
    %v50 = vld [vmem:[%s2] sm:$0x1]
    %v52 = vperm.slane %v50, 0
    %vm54 = vcmask 261120
    %v56 = vsel %vm54, %v45, 0
    %58 = vmatpush.msra.mxu0 0.0
    %59 = vmatpush.msra.mxu0 0.0
    %60 = vmatpush.msra.mxu0 0.0
    %61 = vmatpush.msra.mxu0 0.0
    %62 = vmatpush.msra.mxu0 0.0
    %63 = vmatpush.msra.mxu0 0.0
    %64 = vmatpush.msra.mxu0 0.0
    %65 = vmatpush.msra.mxu0 0.0
    %66 = vmatpush.msra.mxu0 0.0
    %67 = vmatpush.msra.mxu0 0.0
    %68 = vmatpush.msra.mxu0 0.0
    %69 = vmatpush.msra.mxu0 0.0
    %70 = vmatpush.msra.mxu0 %v49
    %71 = vmatpush.msra.mxu0 %v48
    %72 = vmatpush.msra.mxu0 %v47
    %73 = vmatpush.msra.mxu0 %v46
    %74 = vmatmul.f32.gmra.mxu0 %v56
    %v75 = vpop.f32.mrf.mxu0
    %v76 = vadd.f32 %v52, %v75
    %77 = vdwg.mxu0
    %78 = vst [vmem:[#allocation7] sm:$0xff] %v76
    // Predicated region
    $region22: #{tpu_custom_call.1} parent=1 // pred_check
      _
    $region23: #{tpu_custom_call.1} parent=1 // pred_check_branch
      %80 = sbr.rel (0) target = $region25
    $region24: #{tpu_custom_call.1} parent=1 // pred_region
      %82 = vsyncadd [#allocation4], 0
      %s84 = sshll.u32 [#allocation7], 4
      %s85 = int_to_ptr.vmem [resolvable:$true] %s84
      %s86 = sshll.u32 %s3, 4
      %s87 = int_to_ptr.hbm [resolvable:$true] %s86
      %89 = dma.vmem_to_hbm [thread:$0]  %s85, 128, %s87, [#allocation4]
    $region25: #{tpu_custom_call.1} parent=1 // pred_fallthru
      _
    // Predicated region
    $region26: #{tpu_custom_call.1} parent=1 // pred_check
      _
    $region27: #{tpu_custom_call.1} parent=1 // pred_check_branch
      %91 = sbr.rel (0) target = $region29
    $region28: #{tpu_custom_call.1} parent=1 // pred_region
      %93 = dma.done [#allocation4], 128
    $region29: #{tpu_custom_call.1} parent=1 // pred_fallthru
      _
    %94 = vsyncpa [#allocation3], 1
    %95 = vsyncpa [#allocation6], 1
    %96 = vsyncpa [#allocation4], 1

</llo_original>
